<compile_context>
chip_gen: v6e
topology: v6e:2x2x1
jax: 0.10.0
libtpu: 0.0.40
codegen_flags: <defaults>
</compile_context>

<pallas_src>
import functools

import jax
import jax.numpy as jnp
from jax import lax
from jax.experimental import pallas as pl
from jax.experimental.pallas import tpu as pltpu


def _sep_fiber_conv_kernel(
    src_ref,     # (tE, 1)  int32 gather indices (column orientation)
    dst_ref,     # (1, tE)  int32 scatter indices (row orientation -> pre-transposed one-hot)
    eakb_ref,    # (tE, O*(A+K)) fused [edge_attr | kernel_basis] slab, edge-tiled
    xw_hbm,      # (N, O*Cin) pre_linear-folded node features, HBM (pl.ANY), staged once
    we_ref,      # (O*(A+K), 2*O*Cin) fused edge weight [pre_linear_attr | kernel]
    w2_ref,      # (O*Cin, P*Cout) materialized fiber kernel (1/O folded in)
    bias_ref,    # (1, P*Cout) f32
    out_ref,     # (N, P*Cout) f32
    xw_vmem,     # scratch (N, O*Cin), compute dtype — single-buffered node features
    acc_ref,     # scratch (N, O*Cin) f32 — scatter accumulator (x_1)
    *, compute_dtype=jnp.float32,
):
    i = pl.program_id(0)
    n_steps = pl.num_programs(0)
    n_nodes, oc = acc_ref.shape
    t_e = src_ref.shape[0]
    cdt = compute_dtype

    @pl.when(i == 0)
    def _():
        acc_ref[...] = jnp.zeros_like(acc_ref)
        # Stage the node features once (single-buffered constant; avoids 2x VMEM of a
        # double-buffered constant-index BlockSpec).
        pltpu.sync_copy(xw_hbm, xw_vmem)

    # ---- gather x_pre[src] for this edge tile: one-hot MXU matmul -----------------------
    # (0/1 one-hots are exact in bf16, so compute_dtype=bf16 is loss-free for the one-hots.)
    ids_row = lax.broadcasted_iota(jnp.int32, (t_e, n_nodes), 1)
    onehot_src = jnp.where(src_ref[...] == ids_row, 1.0, 0.0).astype(cdt)       # (tE, N)
    xg = jnp.dot(onehot_src, xw_vmem[...],
                 preferred_element_type=jnp.float32)                            # (tE, O*Cin)

    # ---- single fused edge matmul: [ea | kb] @ [[Wpa, 0], [0, Wk]] ----------------------
    edge_out = jnp.dot(eakb_ref[...], we_ref[...],
                       preferred_element_type=jnp.float32)                      # (tE, 2*O*Cin)
    x_s = xg + edge_out[:, :oc]            # pre_linear(cat([x[src], edge_attr]))
    kfeat = edge_out[:, oc:]               # kernel(kernel_basis)
    msg = x_s * kfeat                      # f32 on the VPU

    # ---- scatter_add over destinations: pre-transposed one-hot, straight MXU dot --------
    ids_col = lax.broadcasted_iota(jnp.int32, (n_nodes, t_e), 0)
    onehot_dst = jnp.where(dst_ref[...] == ids_col, 1.0, 0.0).astype(cdt)       # (N, tE)
    acc_ref[...] += jnp.dot(onehot_dst, msg.astype(cdt),
                            preferred_element_type=jnp.float32)                 # (N, O*Cin)

    # ---- epilogue (last edge tile only): x_2 = x_1 @ W2 + bias, lane-dense (N, P*Cout) ---
    # Output block index is constant, so Pallas defers writeback until after the last step.
    @pl.when(i == n_steps - 1)
    def _():
        out_ref[...] = (jnp.dot(acc_ref[...].astype(cdt), w2_ref[...],
                                preferred_element_type=jnp.float32)
                        + bias_ref[...])


def separable_fiber_bundle_conv(x, kernel_basis, fiber_kernel_basis, edge_index,
                                edge_attr, w_pre, w_k, w_fk, bias,
                                *, tile_e=512, compute_dtype=jnp.float32,
                                vmem_limit_bytes=None):
    """groups=1, edge_attr used, add_attr=False, eval-mode forward of SeparableFiberBundleConv.

    compute_dtype: jnp.float32 (exact, default) or jnp.bfloat16 (bf16 MXU operands in HBM,
    f32 accumulation — the fast path on v5e/v6e/v7x).
    """
    N, O, Cin = x.shape
    E = edge_index.shape[1]
    P, _, K = fiber_kernel_basis.shape
    A = edge_attr.shape[2]
    Cout = bias.shape[0]
    OC = O * Cin
    cdt = compute_dtype
    hp = jax.lax.Precision.HIGHEST

    # ---- edge tiling: lane-aligned t_e (multiple of 128; sweep 512-1024 in production,
    #      roughly halve on v7x's 64 MiB VMEM). Padded edges carry index N -> both one-hots
    #      give all-zero rows/columns, so they contribute nothing. ----
    t_e = max(128, (int(tile_e) + 127) // 128 * 128)
    n_tiles = max(1, -(-E // t_e))           # cdiv
    e_pad = n_tiles * t_e
    pad = e_pad - E

    # ---- one-time operand plumbing (tiny XLA ops; all N/E-sized work stays in the kernel) ----
    # Fold pre_linear's x-block into the node features: xw[n,o,c'] = sum_c x[n,o,c]*w_pre[c',c].
    xw = jnp.einsum('noc,dc->nod', x, w_pre[:, :Cin], precision=hp).reshape(N, OC).astype(cdt)

    # Fused per-edge slab [edge_attr | kernel_basis] and the matching fused block-diag weight.
    eakb = jnp.concatenate([edge_attr.reshape(E, O * A),
                            kernel_basis.reshape(E, O * K)], axis=1)
    eakb = jnp.pad(eakb, ((0, pad), (0, 0))).astype(cdt)            # (E_pad, O*(A+K))

    eye_o = jnp.eye(O, dtype=jnp.float32)
    wpa_bd = jnp.kron(eye_o, w_pre[:, Cin:].T)                      # (O*A, O*Cin)
    wk_bd = jnp.kron(eye_o, w_k.T)                                  # (O*K, O*Cin)
    w_edge = jnp.zeros((O * (A + K), 2 * OC), jnp.float32)
    w_edge = w_edge.at[:O * A, :OC].set(wpa_bd)
    w_edge = w_edge.at[O * A:, OC:].set(wk_bd)
    w_edge = w_edge.astype(cdt)

    # Fiber kernel materialized in MXU-friendly (O*Cin, P*Cout) layout with 1/O folded in.
    wfk4 = w_fk.reshape(Cout, Cin, K)
    w2 = (jnp.einsum('pok,dck->ocpd', fiber_kernel_basis, wfk4, precision=hp)
          .reshape(OC, P * Cout) / O).astype(cdt)
    bias_row = jnp.tile(bias, (P,)).reshape(1, P * Cout).astype(jnp.float32)

    # Edge indices: src as a column (gather orientation); dst as a lane ROW so the scatter
    # one-hot is built pre-transposed as (N, tE) and the scatter stays on the straight MXU path.
    # NOTE: assumes max(edge_index[1]) + 1 == N (the module's scatter dim_size); indices >= N
    # (padding, or genuinely out-of-range) are silently dropped — no bounds check.
    src = jnp.pad(edge_index[0].astype(jnp.int32), (0, pad), constant_values=N).reshape(e_pad, 1)
    dst = jnp.pad(edge_index[1].astype(jnp.int32), (0, pad), constant_values=N).reshape(1, e_pad)

    kernel = functools.partial(_sep_fiber_conv_kernel, compute_dtype=cdt)

    grid_spec = pltpu.PrefetchScalarGridSpec(
        num_scalar_prefetch=0,
        grid=(n_tiles,),
        in_specs=[
            pl.BlockSpec((t_e, 1), lambda i: (i, 0)),                  # src column (edge-tiled)
            pl.BlockSpec((1, t_e), lambda i: (0, i)),                  # dst row (edge-tiled lanes)
            pl.BlockSpec((t_e, O * (A + K)), lambda i: (i, 0)),        # fused edge slab
            pl.BlockSpec(memory_space=pl.ANY),                         # xw: HBM, staged once
            pl.BlockSpec((O * (A + K), 2 * OC), lambda i: (0, 0)),     # fused edge weight
            pl.BlockSpec((OC, P * Cout), lambda i: (0, 0)),            # fiber kernel
            pl.BlockSpec((1, P * Cout), lambda i: (0, 0)),             # bias row
        ],
        out_specs=pl.BlockSpec((N, P * Cout), lambda i: (0, 0)),
        scratch_shapes=[pltpu.VMEM((N, OC), cdt),                      # staged node features
                        pltpu.VMEM((N, OC), jnp.float32)],             # scatter accumulator x_1
    )

    out2d = pl.pallas_call(
        kernel,
        out_shape=jax.ShapeDtypeStruct((N, P * Cout), jnp.float32),
        grid_spec=grid_spec,
        compiler_params=pltpu.CompilerParams(
            dimension_semantics=("arbitrary",),        # edge axis reduces into the accumulator
            vmem_limit_bytes=vmem_limit_bytes),
    )(src, dst, eakb, xw, w_edge, w2, bias_row)

    return out2d.reshape(N, P, Cout)


if __name__ == "__main__":
    key = jax.random.PRNGKey(0)
    N, O, Cin, Cout, K, A, P = 16, 8, 4, 4, 7, 3, 8
    E = 300
    ks = jax.random.split(key, 8)

    x = jax.random.normal(ks[0], (N, O, Cin), jnp.float32)
    kernel_basis = jax.random.normal(ks[1], (E, O, K), jnp.float32)
    fiber_kernel_basis = jax.random.normal(ks[2], (P, O, K), jnp.float32)
    edge_attr = jax.random.normal(ks[3], (E, O, A), jnp.float32)
    src = jax.random.randint(ks[4], (E,), 0, N, jnp.int32)
    dst = jnp.arange(E, dtype=jnp.int32) % N        # covers every node -> max(dst) + 1 == N
    edge_index = jnp.stack([src, dst])

    # Parameters (shapes from the module's __init__):
    #   pre_linear: (Cin, Cin+A), kernel: (Cin, K), fiber_kernel: (Cout*Cin, K), bias: (Cout,)
    w_pre = 0.3 * jax.random.normal(ks[5], (Cin, Cin + A), jnp.float32)
    w_k = 0.3 * jax.random.normal(ks[6], (Cin, K), jnp.float32)
    w_fk = 0.3 * jax.random.normal(ks[7], (Cout * Cin, K), jnp.float32)
    bias = 0.1 * jnp.arange(Cout, dtype=jnp.float32)   # module zero-inits; nonzero to exercise add

    out = separable_fiber_bundle_conv(x, kernel_basis, fiber_kernel_basis, edge_index,
                                      edge_attr, w_pre, w_k, w_fk, bias,
                                      tile_e=128)       # 3 edge tiles -> exercises pipelining
    out = jax.block_until_ready(out)

    # Pure-JAX reference mirroring the PyTorch forward (groups=1, add_attr=False, eval mode).
    with jax.default_matmul_precision("highest"):
        x_s = jnp.concatenate([x[src], edge_attr], axis=-1) @ w_pre.T
        message = x_s * (kernel_basis @ w_k.T)
        x_1 = jax.ops.segment_sum(message, dst, num_segments=N)
        fk = fiber_kernel_basis @ w_fk.T                               # (P, O, Cout*Cin)
        x_2 = jnp.einsum('boc,podc->bpd', x_1,
                         fk.reshape(P, O, Cout, Cin)) / fk.shape[-2]
        ref = x_2 + bias

    assert out.shape == (N, P, Cout)
    max_err = float(jnp.max(jnp.abs(out - ref)))
    scale = float(jnp.max(jnp.abs(ref)))
    # Tolerance scaled to the output magnitude: generous enough for MXU f32 pass decomposition
    # (or compute_dtype=bf16), far below any logic-bug-sized error.
    tol = 1e-3 + 2e-2 * scale
    assert max_err <= tol, f"max abs err = {max_err} (scale {scale}, tol {tol})"
    print("KERNEL_OK")
</pallas_src>

<mosaic_0001>
module attributes {stable_mosaic.version = 11 : i64} {
  func.func @_sep_fiber_conv_kernel(%arg0: i32, %arg1: memref<128x1xi32, #tpu.memory_space<vmem>>, %arg2: memref<1x128xi32, #tpu.memory_space<vmem>>, %arg3: memref<128x80xf32, #tpu.memory_space<vmem>>, %arg4: memref<16x32xf32, #tpu.memory_space<any>>, %arg5: memref<80x64xf32, #tpu.memory_space<vmem>>, %arg6: memref<32x32xf32, #tpu.memory_space<vmem>>, %arg7: memref<1x32xf32, #tpu.memory_space<vmem>>, %arg8: memref<16x32xf32, #tpu.memory_space<vmem>>, %arg9: memref<16x32xf32, #tpu.memory_space<vmem>>, %arg10: memref<16x32xf32, #tpu.memory_space<vmem>>) attributes {dimension_semantics = [#tpu.dimension_semantics<arbitrary>], iteration_bounds = array<i64: 3>, scalar_prefetch = 0 : i64, scratch_operands = 2 : i64, tpu.core_type = #tpu.core_type<tc>, window_params = [{transform_indices = @transform_0, window_bounds = array<i64: 128, 1>}, {transform_indices = @transform_1, window_bounds = array<i64: 1, 128>}, {transform_indices = @transform_2, window_bounds = array<i64: 128, 80>}, {}, {pipeline_mode = #tpu.pipeline_mode<synchronous>, transform_indices = @transform_4, window_bounds = array<i64: 80, 64>}, {pipeline_mode = #tpu.pipeline_mode<synchronous>, transform_indices = @transform_5, window_bounds = array<i64: 32, 32>}, {pipeline_mode = #tpu.pipeline_mode<synchronous>, transform_indices = @transform_6, window_bounds = array<i64: 1, 32>}, {pipeline_mode = #tpu.pipeline_mode<synchronous>, transform_indices = @transform_7, window_bounds = array<i64: 16, 32>}]} {
    %c0_i32 = arith.constant 0 : i32
    %0 = arith.cmpi eq, %arg0, %c0_i32 : i32
    %1 = arith.extui %0 : i1 to i32
    %c0_i32_0 = arith.constant 0 : i32
    %2 = arith.cmpi ne, %1, %c0_i32_0 : i32
    scf.if %2 {
      %cst_21 = arith.constant 0.000000e+00 : f32
      %33 = vector.broadcast %cst_21 : f32 to vector<16x32xf32>
      %c0_22 = arith.constant 0 : index
      %c0_23 = arith.constant 0 : index
      %34 = vector.load %arg10[%c0_22, %c0_23] : memref<16x32xf32, #tpu.memory_space<vmem>>, vector<16x32xf32>
      tpu.vector_store %arg10[%c0_22, %c0_23], %33 {strides = array<i32>} : memref<16x32xf32, #tpu.memory_space<vmem>>, vector<16x32xf32>,
      "tpu.region"() ({
        %35 = tpu.sem_alloc : memref<!tpu.dma_semaphore, #tpu.memory_space<semaphore_mem>>
        tpu.enqueue_dma source(%arg4 : memref<16x32xf32, #tpu.memory_space<any>>) target(%arg9 : memref<16x32xf32, #tpu.memory_space<vmem>>) target_semaphore(%35 : memref<!tpu.dma_semaphore, #tpu.memory_space<semaphore_mem>>)
        tpu.wait_dma2 semaphore(%35 : memref<!tpu.dma_semaphore, #tpu.memory_space<semaphore_mem>>) src(%arg4 : memref<16x32xf32, #tpu.memory_space<any>>) dst(%arg9 : memref<16x32xf32, #tpu.memory_space<vmem>>)
        tpu.yield
      }) : () -> ()
    } else {
    }
    %3 = tpu.iota {dimensions = array<i32: 1>} : vector<128x16xi32>
    %c0 = arith.constant 0 : index
    %c0_1 = arith.constant 0 : index
    %4 = vector.load %arg1[%c0, %c0_1] : memref<128x1xi32, #tpu.memory_space<vmem>>, vector<128x1xi32>
    %5 = vector.broadcast %4 : vector<128x1xi32> to vector<128x16xi32>
    %6 = arith.cmpi eq, %5, %3 : vector<128x16xi32>
    %cst = arith.constant 1.000000e+00 : f32
    %cst_2 = arith.constant 0.000000e+00 : f32
    %7 = vector.broadcast %cst : f32 to vector<128x16xf32>
    %8 = vector.broadcast %cst_2 : f32 to vector<128x16xf32>
    %9 = arith.select %6, %7, %8 : vector<128x16xi1>, vector<128x16xf32>
    %c0_3 = arith.constant 0 : index
    %c0_4 = arith.constant 0 : index
    %10 = vector.load %arg9[%c0_3, %c0_4] : memref<16x32xf32, #tpu.memory_space<vmem>>, vector<16x32xf32>
    %cst_5 = arith.constant dense<0.000000e+00> : vector<128x32xf32>
    %11 = tpu.matmul %9, %10, %cst_5 {dimension_numbers = #tpu.dot_dimension_numbers<[1], [0], [0], [1], [0, 0, 1, 1], [], []>} : vector<128x16xf32>, vector<16x32xf32>, vector<128x32xf32> -> vector<128x32xf32>
    %c0_6 = arith.constant 0 : index
    %c0_7 = arith.constant 0 : index
    %12 = vector.load %arg3[%c0_6, %c0_7] : memref<128x80xf32, #tpu.memory_space<vmem>>, vector<128x80xf32>
    %c0_8 = arith.constant 0 : index
    %c0_9 = arith.constant 0 : index
    %13 = vector.load %arg5[%c0_8, %c0_9] : memref<80x64xf32, #tpu.memory_space<vmem>>, vector<80x64xf32>
    %cst_10 = arith.constant dense<0.000000e+00> : vector<128x64xf32>
    %14 = tpu.matmul %12, %13, %cst_10 {dimension_numbers = #tpu.dot_dimension_numbers<[1], [0], [0], [1], [0, 0, 1, 1], [], []>} : vector<128x80xf32>, vector<80x64xf32>, vector<128x64xf32> -> vector<128x64xf32>
    %15 = vector.extract_strided_slice %14 {offsets = [0, 0], sizes = [128, 32], strides = [1, 1]} : vector<128x64xf32> to vector<128x32xf32>
    %16 = arith.addf %11, %15 : vector<128x32xf32>
    %17 = vector.extract_strided_slice %14 {offsets = [0, 32], sizes = [128, 32], strides = [1, 1]} : vector<128x64xf32> to vector<128x32xf32>
    %18 = arith.mulf %16, %17 : vector<128x32xf32>
    %19 = tpu.iota {dimensions = array<i32: 0>} : vector<16x128xi32>
    %c0_11 = arith.constant 0 : index
    %c0_12 = arith.constant 0 : index
    %20 = vector.load %arg2[%c0_11, %c0_12] : memref<1x128xi32, #tpu.memory_space<vmem>>, vector<1x128xi32>
    %21 = vector.broadcast %20 : vector<1x128xi32> to vector<16x128xi32>
    %22 = arith.cmpi eq, %21, %19 : vector<16x128xi32>
    %cst_13 = arith.constant 1.000000e+00 : f32
    %cst_14 = arith.constant 0.000000e+00 : f32
    %23 = vector.broadcast %cst_13 : f32 to vector<16x128xf32>
    %24 = vector.broadcast %cst_14 : f32 to vector<16x128xf32>
    %25 = arith.select %22, %23, %24 : vector<16x128xi1>, vector<16x128xf32>
    %c0_15 = arith.constant 0 : index
    %c0_16 = arith.constant 0 : index
    %26 = vector.load %arg10[%c0_15, %c0_16] : memref<16x32xf32, #tpu.memory_space<vmem>>, vector<16x32xf32>
    %cst_17 = arith.constant dense<0.000000e+00> : vector<16x32xf32>
    %27 = tpu.matmul %25, %18, %cst_17 {dimension_numbers = #tpu.dot_dimension_numbers<[1], [0], [0], [1], [0, 0, 1, 1], [], []>} : vector<16x128xf32>, vector<128x32xf32>, vector<16x32xf32> -> vector<16x32xf32>
    %28 = arith.addf %26, %27 : vector<16x32xf32>
    %c0_18 = arith.constant 0 : index
    %c0_19 = arith.constant 0 : index
    %29 = vector.load %arg10[%c0_18, %c0_19] : memref<16x32xf32, #tpu.memory_space<vmem>>, vector<16x32xf32>
    tpu.vector_store %arg10[%c0_18, %c0_19], %28 {strides = array<i32>} : memref<16x32xf32, #tpu.memory_space<vmem>>, vector<16x32xf32>,
    %c2_i32 = arith.constant 2 : i32
    %30 = arith.cmpi eq, %arg0, %c2_i32 : i32
    %31 = arith.extui %30 : i1 to i32
    %c0_i32_20 = arith.constant 0 : i32
    %32 = arith.cmpi ne, %31, %c0_i32_20 : i32
    scf.if %32 {
      %c0_21 = arith.constant 0 : index
      %c0_22 = arith.constant 0 : index
      %33 = vector.load %arg10[%c0_21, %c0_22] : memref<16x32xf32, #tpu.memory_space<vmem>>, vector<16x32xf32>
      %c0_23 = arith.constant 0 : index
      %c0_24 = arith.constant 0 : index
      %34 = vector.load %arg6[%c0_23, %c0_24] : memref<32x32xf32, #tpu.memory_space<vmem>>, vector<32x32xf32>
      %cst_25 = arith.constant dense<0.000000e+00> : vector<16x32xf32>
      %35 = tpu.matmul %33, %34, %cst_25 {dimension_numbers = #tpu.dot_dimension_numbers<[1], [0], [0], [1], [0, 0, 1, 1], [], []>} : vector<16x32xf32>, vector<32x32xf32>, vector<16x32xf32> -> vector<16x32xf32>
      %c0_26 = arith.constant 0 : index
      %c0_27 = arith.constant 0 : index
      %36 = vector.load %arg7[%c0_26, %c0_27] : memref<1x32xf32, #tpu.memory_space<vmem>>, vector<1x32xf32>
      %37 = vector.broadcast %36 : vector<1x32xf32> to vector<16x32xf32>
      %38 = arith.addf %35, %37 : vector<16x32xf32>
      %c0_28 = arith.constant 0 : index
      %c0_29 = arith.constant 0 : index
      %39 = vector.load %arg8[%c0_28, %c0_29] : memref<16x32xf32, #tpu.memory_space<vmem>>, vector<16x32xf32>
      tpu.vector_store %arg8[%c0_28, %c0_29], %38 {strides = array<i32>} : memref<16x32xf32, #tpu.memory_space<vmem>>, vector<16x32xf32>,
    } else {
    }
    return
  }
  func.func @transform_0(%arg0: i32) -> (i32, i32) {
    %c0_i32 = arith.constant 0 : i32
    %c0_i32_0 = arith.constant 0 : i32
    return %arg0, %c0_i32 : i32, i32
  }
  func.func @transform_1(%arg0: i32) -> (i32, i32) {
    %c0_i32 = arith.constant 0 : i32
    %c0_i32_0 = arith.constant 0 : i32
    return %c0_i32, %arg0 : i32, i32
  }
  func.func @transform_2(%arg0: i32) -> (i32, i32) {
    %c0_i32 = arith.constant 0 : i32
    %c0_i32_0 = arith.constant 0 : i32
    return %arg0, %c0_i32 : i32, i32
  }
  func.func @transform_4(%arg0: i32) -> (i32, i32) {
    %c0_i32 = arith.constant 0 : i32
    %c0_i32_0 = arith.constant 0 : i32
    %c0_i32_1 = arith.constant 0 : i32
    return %c0_i32, %c0_i32_0 : i32, i32
  }
  func.func @transform_5(%arg0: i32) -> (i32, i32) {
    %c0_i32 = arith.constant 0 : i32
    %c0_i32_0 = arith.constant 0 : i32
    %c0_i32_1 = arith.constant 0 : i32
    return %c0_i32, %c0_i32_0 : i32, i32
  }
  func.func @transform_6(%arg0: i32) -> (i32, i32) {
    %c0_i32 = arith.constant 0 : i32
    %c0_i32_0 = arith.constant 0 : i32
    %c0_i32_1 = arith.constant 0 : i32
    return %c0_i32, %c0_i32_0 : i32, i32
  }
  func.func @transform_7(%arg0: i32) -> (i32, i32) {
    %c0_i32 = arith.constant 0 : i32
    %c0_i32_0 = arith.constant 0 : i32
    %c0_i32_1 = arith.constant 0 : i32
    return %c0_i32, %c0_i32_0 : i32, i32
  }
}

</mosaic_0001>

<llo_original>
// kernel: tpu_custom_call.1
$region0: #{tpu_custom_call.1}
  #allocation0 [shape = 'u32[]', space=smem, size = 0x4, offset = 0x4, fixed_abs, tag = 'smem constant byte address 0x4 - core index']
  #allocation1 [shape = 'u32[144,128]{1,0:T(1,128)}', space=vmem, size = 0x12000, scoped, tag = 'internal scratch']
  #allocation2 [shape = 'f32[16,32]{1,0:T(8,128)}', space=vmem, size = 0x2000, scoped, tag = 'scratch operand']
  #allocation3 [shape = 'f32[16,32]{1,0:T(8,128)}', space=vmem, size = 0x2000, scoped, tag = 'scratch operand']
  #allocation7 [shape = 's32[]', space=sflag, size = 0x4, offset = 0, fixed_abs, tag = 'sflag constant byte address 0x0 - dummy sync flag']
  %s0 = inlined_call_operand.vmem [shape: s32[384,1], index: 0, kind: input, shape index: {}]
  %s1 = inlined_call_operand.vmem [shape: s32[1,384], index: 1, kind: input, shape index: {}]
  %s2 = inlined_call_operand.vmem [shape: f32[384,80], index: 2, kind: input, shape index: {}]
  %s3 = inlined_call_operand.vmem [shape: f32[16,32], index: 3, kind: input, shape index: {}]
  %s4 = inlined_call_operand.vmem [shape: f32[80,64], index: 4, kind: input, shape index: {}]
  %s5 = inlined_call_operand.vmem [shape: f32[32,32], index: 5, kind: input, shape index: {}]
  %s6 = inlined_call_operand.vmem [shape: f32[1,32], index: 6, kind: input, shape index: {}]
  %s7 = inlined_call_operand.hbm [shape: f32[16,32], index: 7, kind: output, shape index: {}]
  %s8 = sld [smem:[#allocation0]]
  $region100: #{tpu_custom_call.1} parent=0
    _
  %s10 = ssub.s32 1, %s8
  %s11 = scalar_select 0, %s10, %s8
  $region1: #{tpu_custom_call.1} parent=0
    #allocation4 [shape = 'u8[8192]{0}', space=vmem, size = 0x2000, scoped, tag = 'output window, operand 0, single buffered']
    #allocation5 [shape = 's32[2]{0}', space=sflag, size = 0x8, scoped, tag = 'scoped memory for tpu_custom_call.1']
    %12 = vsyncpa [#allocation5], 0
    loop: start=0, step=1, limit=5
    $region2: #{tpu_custom_call.1} parent=1 // loop_pre_header
      _
    $region3: #{tpu_custom_call.1} parent=1 // loop_header
      %s14 = sphi 0, %s18
      %p15 = scmp.ge.s32.totalorder %s14, 5
      %s24 = sphi 0, %s26
      %s27 = sphi 0, %s24
      %s28 = sphi 0, %s27
      %s44 = sphi 0, %s28
      %s50 = sphi 0, %s52
      %s53 = sphi 0, %s50
      %s54 = sphi 0, %s53
      %s70 = sphi 0, %s54
      %s76 = sphi 0, %s78
      %s79 = sphi 0, %s76
      %s80 = sphi 0, %s79
      %s96 = sphi 0, %s80
      %s100 = sphi 0, %s100
      %s102 = sphi 0, %s100
      %s103 = sphi 0, %s102
      %s117 = sphi 0, %s103
      %s121 = sphi 0, %s121
      %s123 = sphi 0, %s121
      %s124 = sphi 0, %s123
      %s138 = sphi 0, %s124
      %s142 = sphi 0, %s142
      %s144 = sphi 0, %s142
      %s145 = sphi 0, %s144
      %s159 = sphi 0, %s145
      %s163 = sphi 0, %s163
      %s165 = sphi 0, %s163
      %s166 = sphi 0, %s165
      %s180 = sphi 0, %s166
    $region4: #{tpu_custom_call.1} parent=1 // loop_header_branch
      %17 = sbr.rel (%p15) target = $region8
    $region5: #{tpu_custom_call.1} parent=1 // loop_body
      %s19 = ssub.s32 %s14, 1
      %s20 = ssub.s32 %s14, 2
      %s21 = sadd.s32 %s14, 1
      %s22 = ssub.s32 %s14, %s21
      %p23 = scmp.eq.s32.totalorder %s22, 0
      %s25 = sadd.s32 %s24, 1
      %s26 = scalar_select %p23, %s24, %s25
      %p29 = pneg %p23
      %p30 = scmp.eq.s32.totalorder %s14, 2
      %p31 = por %p29, %p30
      %p32 = scmp.ne.s32.totalorder %s24, %s27
      %p33 = scmp.eq.s32.totalorder %s14, 0
      %p34 = por %p32, %p33
      %p35 = scmp.ne.s32.totalorder %s24, %s27
      %p36 = scmp.eq.s32.totalorder %s19, 2
      %p37 = por %p35, %p36
      %p38 = scmp.ne.s32.totalorder %s27, %s28
      %p39 = scmp.eq.s32.totalorder %s19, 0
      %p40 = por %p38, %p39
      %p41 = scmp.ne.s32.totalorder %s27, %s28
      %p42 = scmp.eq.s32.totalorder %s20, 2
      %p43 = por %p41, %p42
      %p45 = scmp.ne.s32.totalorder %s28, %s44
      %p46 = scmp.eq.s32.totalorder %s20, 0
      %p47 = por %p45, %p46
      %s48 = ssub.s32 %s14, %s21
      %p49 = scmp.eq.s32.totalorder %s48, 0
      %s51 = sadd.s32 %s50, 1
      %s52 = scalar_select %p49, %s50, %s51
      %p55 = pneg %p49
      %p56 = scmp.eq.s32.totalorder %s14, 2
      %p57 = por %p55, %p56
      %p58 = scmp.ne.s32.totalorder %s50, %s53
      %p59 = scmp.eq.s32.totalorder %s14, 0
      %p60 = por %p58, %p59
      %p61 = scmp.ne.s32.totalorder %s50, %s53
      %p62 = scmp.eq.s32.totalorder %s19, 2
      %p63 = por %p61, %p62
      %p64 = scmp.ne.s32.totalorder %s53, %s54
      %p65 = scmp.eq.s32.totalorder %s19, 0
      %p66 = por %p64, %p65
      %p67 = scmp.ne.s32.totalorder %s53, %s54
      %p68 = scmp.eq.s32.totalorder %s20, 2
      %p69 = por %p67, %p68
      %p71 = scmp.ne.s32.totalorder %s54, %s70
      %p72 = scmp.eq.s32.totalorder %s20, 0
      %p73 = por %p71, %p72
      %s74 = ssub.s32 %s14, %s21
      %p75 = scmp.eq.s32.totalorder %s74, 0
      %s77 = sadd.s32 %s76, 1
      %s78 = scalar_select %p75, %s76, %s77
      %p81 = pneg %p75
      %p82 = scmp.eq.s32.totalorder %s14, 2
      %p83 = por %p81, %p82
      %p84 = scmp.ne.s32.totalorder %s76, %s79
      %p85 = scmp.eq.s32.totalorder %s14, 0
      %p86 = por %p84, %p85
      %p87 = scmp.ne.s32.totalorder %s76, %s79
      %p88 = scmp.eq.s32.totalorder %s19, 2
      %p89 = por %p87, %p88
      %p90 = scmp.ne.s32.totalorder %s79, %s80
      %p91 = scmp.eq.s32.totalorder %s19, 0
      %p92 = por %p90, %p91
      %p93 = scmp.ne.s32.totalorder %s79, %s80
      %p94 = scmp.eq.s32.totalorder %s20, 2
      %p95 = por %p93, %p94
      %p97 = scmp.ne.s32.totalorder %s80, %s96
      %p98 = scmp.eq.s32.totalorder %s20, 0
      %p99 = por %p97, %p98
      %s101 = sadd.s32 %s100, 1
      %p104 = scmp.eq.s32.totalorder %s14, 2
      %p105 = scmp.ne.s32.totalorder %s100, %s102
      %p106 = scmp.eq.s32.totalorder %s14, 0
      %p107 = por %p105, %p106
      %p108 = scmp.ne.s32.totalorder %s100, %s102
      %p109 = scmp.eq.s32.totalorder %s19, 2
      %p110 = por %p108, %p109
      %p111 = scmp.ne.s32.totalorder %s102, %s103
      %p112 = scmp.eq.s32.totalorder %s19, 0
      %p113 = por %p111, %p112
      %p114 = scmp.ne.s32.totalorder %s102, %s103
      %p115 = scmp.eq.s32.totalorder %s20, 2
      %p116 = por %p114, %p115
      %p118 = scmp.ne.s32.totalorder %s103, %s117
      %p119 = scmp.eq.s32.totalorder %s20, 0
      %p120 = por %p118, %p119
      %s122 = sadd.s32 %s121, 1
      %p125 = scmp.eq.s32.totalorder %s14, 2
      %p126 = scmp.ne.s32.totalorder %s121, %s123
      %p127 = scmp.eq.s32.totalorder %s14, 0
      %p128 = por %p126, %p127
      %p129 = scmp.ne.s32.totalorder %s121, %s123
      %p130 = scmp.eq.s32.totalorder %s19, 2
      %p131 = por %p129, %p130
      %p132 = scmp.ne.s32.totalorder %s123, %s124
      %p133 = scmp.eq.s32.totalorder %s19, 0
      %p134 = por %p132, %p133
      %p135 = scmp.ne.s32.totalorder %s123, %s124
      %p136 = scmp.eq.s32.totalorder %s20, 2
      %p137 = por %p135, %p136
      %p139 = scmp.ne.s32.totalorder %s124, %s138
      %p140 = scmp.eq.s32.totalorder %s20, 0
      %p141 = por %p139, %p140
      %s143 = sadd.s32 %s142, 1
      %p146 = scmp.eq.s32.totalorder %s14, 2
      %p147 = scmp.ne.s32.totalorder %s142, %s144
      %p148 = scmp.eq.s32.totalorder %s14, 0
      %p149 = por %p147, %p148
      %p150 = scmp.ne.s32.totalorder %s142, %s144
      %p151 = scmp.eq.s32.totalorder %s19, 2
      %p152 = por %p150, %p151
      %p153 = scmp.ne.s32.totalorder %s144, %s145
      %p154 = scmp.eq.s32.totalorder %s19, 0
      %p155 = por %p153, %p154
      %p156 = scmp.ne.s32.totalorder %s144, %s145
      %p157 = scmp.eq.s32.totalorder %s20, 2
      %p158 = por %p156, %p157
      %p160 = scmp.ne.s32.totalorder %s145, %s159
      %p161 = scmp.eq.s32.totalorder %s20, 0
      %p162 = por %p160, %p161
      %s164 = sadd.s32 %s163, 1
      %p167 = scmp.eq.s32.totalorder %s14, 2
      %p168 = scmp.ne.s32.totalorder %s163, %s165
      %p169 = scmp.eq.s32.totalorder %s14, 0
      %p170 = por %p168, %p169
      %p171 = scmp.ne.s32.totalorder %s163, %s165
      %p172 = scmp.eq.s32.totalorder %s19, 2
      %p173 = por %p171, %p172
      %p174 = scmp.ne.s32.totalorder %s165, %s166
      %p175 = scmp.eq.s32.totalorder %s19, 0
      %p176 = por %p174, %p175
      %p177 = scmp.ne.s32.totalorder %s165, %s166
      %p178 = scmp.eq.s32.totalorder %s20, 2
      %p179 = por %p177, %p178
      %p181 = scmp.ne.s32.totalorder %s166, %s180
      %p182 = scmp.eq.s32.totalorder %s20, 0
      %p183 = por %p181, %p182
      %p184 = scmp.le.s32.totalorder 1, %s14
      %p185 = scmp.lt.s32.totalorder %s14, 4
      %p186 = pnand %p184, %p185
      %p187 = pneg %p186
      // Predicated region
      $region9: #{tpu_custom_call.1} parent=5 // pred_check
        _
      $region10: #{tpu_custom_call.1} parent=5 // pred_check_branch
        %189 = sbr.rel (%p186) target = $region12
      $region11: #{tpu_custom_call.1} parent=5 // pred_region
        %s190 = ssub.s32 %s14, 1
        // Predicated region
        $region13: #{tpu_custom_call.1} parent=11 // pred_check
          %p191 = pneg %p113
        $region14: #{tpu_custom_call.1} parent=11 // pred_check_branch
          %193 = sbr.rel (%p191) target = $region16
        $region15: #{tpu_custom_call.1} parent=11 // pred_region
          _
        $region16: #{tpu_custom_call.1} parent=11 // pred_fallthru
          _
        // Predicated region
        $region17: #{tpu_custom_call.1} parent=11 // pred_check
          %p194 = pneg %p134
        $region18: #{tpu_custom_call.1} parent=11 // pred_check_branch
          %196 = sbr.rel (%p194) target = $region20
        $region19: #{tpu_custom_call.1} parent=11 // pred_region
          _
        $region20: #{tpu_custom_call.1} parent=11 // pred_fallthru
          _
        // Predicated region
        $region21: #{tpu_custom_call.1} parent=11 // pred_check
          %p197 = pneg %p155
        $region22: #{tpu_custom_call.1} parent=11 // pred_check_branch
          %199 = sbr.rel (%p197) target = $region24
        $region23: #{tpu_custom_call.1} parent=11 // pred_region
          _
        $region24: #{tpu_custom_call.1} parent=11 // pred_fallthru
          _
      $region12: #{tpu_custom_call.1} parent=5 // pred_fallthru
        _
      %p200 = scmp.lt.s32.totalorder %s14, 3
      // Predicated region
      $region25: #{tpu_custom_call.1} parent=5 // pred_check
        %p201 = pneg %p200
      $region26: #{tpu_custom_call.1} parent=5 // pred_check_branch
        %203 = sbr.rel (%p201) target = $region28
      $region27: #{tpu_custom_call.1} parent=5 // pred_region
        // Predicated region
        $region29: #{tpu_custom_call.1} parent=27 // pred_check
          %p204 = pneg %p34
        $region30: #{tpu_custom_call.1} parent=27 // pred_check_branch
          %206 = sbr.rel (%p204) target = $region32
        $region31: #{tpu_custom_call.1} parent=27 // pred_region
          %s207 = smul.u32 16, %s14
          %p208 = scmp.lt.s32.totalorder %s207, 47
          %s209 = scalar_select %p208, %s207, 47
          %s210 = smul.addr %s209, 8
          %s211 = scalar_lea.vmem %s0, %s210
          %s212 = smul.u32 16, %s14
        $region32: #{tpu_custom_call.1} parent=27 // pred_fallthru
          _
        // Predicated region
        $region33: #{tpu_custom_call.1} parent=27 // pred_check
          %p213 = pneg %p60
        $region34: #{tpu_custom_call.1} parent=27 // pred_check_branch
          %215 = sbr.rel (%p213) target = $region36
        $region35: #{tpu_custom_call.1} parent=27 // pred_region
          %p216 = scmp.lt.s32.totalorder %s14, 2
          %s217 = scalar_select %p216, %s14, 2
          %s218 = scalar_lea.vmem %s1, %s217
        $region36: #{tpu_custom_call.1} parent=27 // pred_fallthru
          _
        // Predicated region
        $region37: #{tpu_custom_call.1} parent=27 // pred_check
          %p219 = pneg %p86
        $region38: #{tpu_custom_call.1} parent=27 // pred_check_branch
          %221 = sbr.rel (%p219) target = $region40
        $region39: #{tpu_custom_call.1} parent=27 // pred_region
          %s222 = smul.u32 16, %s14
          %p223 = scmp.lt.s32.totalorder %s222, 47
          %s224 = scalar_select %p223, %s222, 47
          %s225 = smul.addr %s224, 8
          %s226 = scalar_lea.vmem %s2, %s225
          %s227 = smul.u32 16, %s14
        $region40: #{tpu_custom_call.1} parent=27 // pred_fallthru
          _
      $region28: #{tpu_custom_call.1} parent=5 // pred_fallthru
        _
      %p228 = scmp.le.s32.totalorder 1, %s14
      %p229 = scmp.lt.s32.totalorder %s14, 4
      %p230 = pnand %p228, %p229
      %p231 = pneg %p230
      // Predicated region
      $region41: #{tpu_custom_call.1} parent=5 // pred_check
        _
      $region42: #{tpu_custom_call.1} parent=5 // pred_check_branch
        %233 = sbr.rel (%p230) target = $region44
      $region43: #{tpu_custom_call.1} parent=5 // pred_region
        %s234 = ssub.s32 %s14, 1
        %s235 = smul.u32 16, %s19
        %p236 = scmp.lt.s32.totalorder %s235, 47
        %s237 = scalar_select %p236, %s235, 47
        %s238 = smul.addr %s237, 8
        %s239 = scalar_lea.vmem %s0, %s238
        %p240 = pneg %p40
        %p241 = pneg %p37
        %p242 = scmp.lt.s32.totalorder %s19, 2
        %s243 = scalar_select %p242, %s19, 2
        %s244 = scalar_lea.vmem %s1, %s243
        %p245 = pneg %p66
        %p246 = pneg %p63
        %s247 = smul.u32 16, %s19
        %p248 = scmp.lt.s32.totalorder %s247, 47
        %s249 = scalar_select %p248, %s247, 47
        %s250 = smul.addr %s249, 8
        %s251 = scalar_lea.vmem %s2, %s250
        %p252 = pneg %p92
        %p253 = pneg %p89
        %p254 = pneg %p113
        %p255 = pneg %p110
        %p256 = pneg %p134
        %p257 = pneg %p131
        %p258 = pneg %p155
        %p259 = pneg %p152
        %p260 = pneg %p176
        %p261 = pneg %p173
        %s262 = smul.u32 16, %s19
        %p263 = scmp.lt.s32.totalorder %s262, 47
        %s264 = scalar_select %p263, %s262, 47
        %s265 = smul.addr %s264, 8
        %s266 = scalar_lea.vmem %s0, %s265
        %s267 = smul.u32 16, %s19
        %p268 = scmp.lt.s32.totalorder %s19, 2
        %s269 = scalar_select %p268, %s19, 2
        %s270 = scalar_lea.vmem %s1, %s269
        %s271 = smul.u32 16, %s19
        %p272 = scmp.lt.s32.totalorder %s271, 47
        %s273 = scalar_select %p272, %s271, 47
        %s274 = smul.addr %s273, 8
        %s275 = scalar_lea.vmem %s2, %s274
        %s276 = smul.u32 16, %s19
        %p277 = scmp.eq.s32.totalorder %s19, 0
        // Predicated region
        $region45: #{tpu_custom_call.1} parent=43 // pred_check
          %p278 = pneg %p277
        $region46: #{tpu_custom_call.1} parent=43 // pred_check_branch
          %280 = sbr.rel (%p278) target = $region48
        $region47: #{tpu_custom_call.1} parent=43 // pred_region
          %vm281 = vcmask 261120
          %282 = vst.msk [vmem:[#allocation3] sm:$0xff] %vm281, 0.0
          %283 = vst.msk [vmem:[#allocation3 + $0x8] sm:$0xff] %vm281, 0.0
          $region49: #{tpu_custom_call.1} parent=47
            #allocation6 [shape = 's32[1]{0}', space=sflag, size = 0x4, scoped, tag = 'scoped memory for tpu_custom_call.1']
            %p285 = scmp.lt.u32.totalorder 16, 8
            %p286 = pneg %p285
            // Predicated region
            $region50: #{tpu_custom_call.1} parent=49 // pred_check
              _
            $region51: #{tpu_custom_call.1} parent=49 // pred_check_branch
              %288 = sbr.rel (%p285) target = $region53
            $region52: #{tpu_custom_call.1} parent=49 // pred_region
              %s304 = sand.u32 16, 7
              %p305 = scmp.eq.s32.totalorder %s304, 0
              // Predicated region
              $region65: #{tpu_custom_call.1} parent=52 // pred_check
                %p306 = pneg %p305
              $region66: #{tpu_custom_call.1} parent=52 // pred_check_branch
                %308 = sbr.rel (%p306) target = $region68
              $region67: #{tpu_custom_call.1} parent=52 // pred_region
                loop: start=0, step=1, limit=1
                $region69: #{tpu_custom_call.1} parent=67 // loop_pre_header
                  _
                $region70: #{tpu_custom_call.1} parent=67 // loop_header
                  %s310 = sphi 0, %s314
                  %p311 = scmp.ge.s32.totalorder %s310, 1
                  %s315 = sphi %s3, %s3
                  %s316 = sphi [#allocation2], [#allocation2]
                $region71: #{tpu_custom_call.1} parent=67 // loop_header_branch
                  %313 = sbr.rel (%p311) target = $region75
                $region72: #{tpu_custom_call.1} parent=67 // loop_body
                  %v317 = vld [vmem:[%s315] sm:$0xff]
                  %318 = vst [vmem:[%s316] sm:$0xff] %v317
                  %v319 = vld [vmem:[%s315 + $0x8] sm:$0xff]
                  %320 = vst [vmem:[%s316 + $0x8] sm:$0xff] %v319
                $region73: #{tpu_custom_call.1} parent=67 // loop_footer
                  %s314 = sadd.s32 1, %s310
                $region74: #{tpu_custom_call.1} parent=67 // loop_footer_branch
                  %309 = sbr.rel target = $region70
                $region75: #{tpu_custom_call.1} parent=67 // loop_exit
                  _
              $region68: #{tpu_custom_call.1} parent=52 // pred_fallthru
                _
              %p321 = pneg %p305
              // Predicated region
              $region76: #{tpu_custom_call.1} parent=52 // pred_check
                _
              $region77: #{tpu_custom_call.1} parent=52 // pred_check_branch
                %323 = sbr.rel (%p305) target = $region79
              $region78: #{tpu_custom_call.1} parent=52 // pred_region
                %s324 = sand.u32 16, 7
              $region79: #{tpu_custom_call.1} parent=52 // pred_fallthru
                _
            $region53: #{tpu_custom_call.1} parent=49 // pred_fallthru
              _
            // Predicated region
            $region54: #{tpu_custom_call.1} parent=49 // pred_check
              %p289 = pneg %p285
            $region55: #{tpu_custom_call.1} parent=49 // pred_check_branch
              %291 = sbr.rel (%p289) target = $region57
            $region56: #{tpu_custom_call.1} parent=49 // pred_region
              %s292 = sshll.u32 1, 16
              %s293 = ssub.s32 %s292, 1
              loop: start=0, step=1, limit=1
              $region58: #{tpu_custom_call.1} parent=56 // loop_pre_header
                _
              $region59: #{tpu_custom_call.1} parent=56 // loop_header
                %s295 = sphi 0, %s299
                %p296 = scmp.ge.s32.totalorder %s295, 1
                %s300 = sphi %s3, %s3
                %s301 = sphi [#allocation2], [#allocation2]
              $region60: #{tpu_custom_call.1} parent=56 // loop_header_branch
                %298 = sbr.rel (%p296) target = $region64
              $region61: #{tpu_custom_call.1} parent=56 // loop_body
                %v302 = vld [vmem:[%s300] sm:%s293]
                %303 = vst [vmem:[%s301] sm:%s293] %v302
              $region62: #{tpu_custom_call.1} parent=56 // loop_footer
                %s299 = sadd.s32 1, %s295
              $region63: #{tpu_custom_call.1} parent=56 // loop_footer_branch
                %294 = sbr.rel target = $region59
              $region64: #{tpu_custom_call.1} parent=56 // loop_exit
                _
            $region57: #{tpu_custom_call.1} parent=49 // pred_fallthru
              _
            // Predicated region
            $region80: #{tpu_custom_call.1} parent=49 // pred_check
              _
            $region81: #{tpu_custom_call.1} parent=49 // pred_check_branch
              %327 = sbr.rel (0) target = $region83
            $region82: #{tpu_custom_call.1} parent=49 // pred_region
              %328 = vsyncadd [#allocation6], 256
            $region83: #{tpu_custom_call.1} parent=49 // pred_fallthru
              _
            %s329 = smul.u32 16, 1
            %s330 = sshll.u32 %s329, 4
            %331 = dma.done [#allocation6], %s330
        $region48: #{tpu_custom_call.1} parent=43 // pred_fallthru
          _
        %v332 = vlaneseq
        %v333 = vand.u32 %v332, 127
        %v334 = vld [vmem:[%s266] sm:$0xff]
        %v335 = vld [vmem:[%s266 + $0x8] sm:$0xff]
        %v336 = vld [vmem:[%s266 + $0x10] sm:$0xff]
        %v337 = vld [vmem:[%s266 + $0x18] sm:$0xff]
        %v338 = vld [vmem:[%s266 + $0x20] sm:$0xff]
        %v339 = vld [vmem:[%s266 + $0x28] sm:$0xff]
        %v340 = vld [vmem:[%s266 + $0x30] sm:$0xff]
        %v341 = vld [vmem:[%s266 + $0x38] sm:$0xff]
        %v342 = vld [vmem:[%s266 + $0x40] sm:$0xff]
        %v343 = vld [vmem:[%s266 + $0x48] sm:$0xff]
        %v344 = vld [vmem:[%s266 + $0x50] sm:$0xff]
        %v345 = vld [vmem:[%s266 + $0x58] sm:$0xff]
        %v346 = vld [vmem:[%s266 + $0x60] sm:$0xff]
        %v347 = vld [vmem:[%s266 + $0x68] sm:$0xff]
        %v348 = vld [vmem:[%s266 + $0x70] sm:$0xff]
        %v349 = vld [vmem:[%s266 + $0x78] sm:$0xff]
        %350 = vset.pattern.permute.xlu0 0
        %351 = vperm.xlu0 %350, %v334
        %v352 = vpop.permute.xlu0 %351
        %353 = vset.pattern.permute.xlu0 0
        %354 = vperm.xlu0 %353, %v335
        %v355 = vpop.permute.xlu0 %354
        %356 = vset.pattern.permute.xlu0 0
        %357 = vperm.xlu0 %356, %v336
        %v358 = vpop.permute.xlu0 %357
        %359 = vset.pattern.permute.xlu0 0
        %360 = vperm.xlu0 %359, %v337
        %v361 = vpop.permute.xlu0 %360
        %362 = vset.pattern.permute.xlu0 0
        %363 = vperm.xlu0 %362, %v338
        %v364 = vpop.permute.xlu0 %363
        %365 = vset.pattern.permute.xlu0 0
        %366 = vperm.xlu0 %365, %v339
        %v367 = vpop.permute.xlu0 %366
        %368 = vset.pattern.permute.xlu0 0
        %369 = vperm.xlu0 %368, %v340
        %v370 = vpop.permute.xlu0 %369
        %371 = vset.pattern.permute.xlu0 0
        %372 = vperm.xlu0 %371, %v341
        %v373 = vpop.permute.xlu0 %372
        %374 = vset.pattern.permute.xlu0 0
        %375 = vperm.xlu0 %374, %v342
        %v376 = vpop.permute.xlu0 %375
        %377 = vset.pattern.permute.xlu0 0
        %378 = vperm.xlu0 %377, %v343
        %v379 = vpop.permute.xlu0 %378
        %380 = vset.pattern.permute.xlu0 0
        %381 = vperm.xlu0 %380, %v344
        %v382 = vpop.permute.xlu0 %381
        %383 = vset.pattern.permute.xlu0 0
        %384 = vperm.xlu0 %383, %v345
        %v385 = vpop.permute.xlu0 %384
        %386 = vset.pattern.permute.xlu0 0
        %387 = vperm.xlu0 %386, %v346
        %v388 = vpop.permute.xlu0 %387
        %389 = vset.pattern.permute.xlu0 0
        %390 = vperm.xlu0 %389, %v347
        %v391 = vpop.permute.xlu0 %390
        %392 = vset.pattern.permute.xlu0 0
        %393 = vperm.xlu0 %392, %v348
        %v394 = vpop.permute.xlu0 %393
        %395 = vset.pattern.permute.xlu0 0
        %396 = vperm.xlu0 %395, %v349
        %v397 = vpop.permute.xlu0 %396
        %vm398 = vcmp.eq.s32.totalorder %v352, %v333
        %vm399 = vcmp.eq.s32.totalorder %v355, %v333
        %vm400 = vcmp.eq.s32.totalorder %v358, %v333
        %vm401 = vcmp.eq.s32.totalorder %v361, %v333
        %vm402 = vcmp.eq.s32.totalorder %v364, %v333
        %vm403 = vcmp.eq.s32.totalorder %v367, %v333
        %vm404 = vcmp.eq.s32.totalorder %v370, %v333
        %vm405 = vcmp.eq.s32.totalorder %v373, %v333
        %vm406 = vcmp.eq.s32.totalorder %v376, %v333
        %vm407 = vcmp.eq.s32.totalorder %v379, %v333
        %vm408 = vcmp.eq.s32.totalorder %v382, %v333
        %vm409 = vcmp.eq.s32.totalorder %v385, %v333
        %vm410 = vcmp.eq.s32.totalorder %v388, %v333
        %vm411 = vcmp.eq.s32.totalorder %v391, %v333
        %vm412 = vcmp.eq.s32.totalorder %v394, %v333
        %vm413 = vcmp.eq.s32.totalorder %v397, %v333
        %v414 = vsel %vm398, 1.0, 0.0
        %v415 = vsel %vm399, 1.0, 0.0
        %v416 = vsel %vm400, 1.0, 0.0
        %v417 = vsel %vm401, 1.0, 0.0
        %v418 = vsel %vm402, 1.0, 0.0
        %v419 = vsel %vm403, 1.0, 0.0
        %v420 = vsel %vm404, 1.0, 0.0
        %v421 = vsel %vm405, 1.0, 0.0
        %v422 = vsel %vm406, 1.0, 0.0
        %v423 = vsel %vm407, 1.0, 0.0
        %v424 = vsel %vm408, 1.0, 0.0
        %v425 = vsel %vm409, 1.0, 0.0
        %v426 = vsel %vm410, 1.0, 0.0
        %v427 = vsel %vm411, 1.0, 0.0
        %v428 = vsel %vm412, 1.0, 0.0
        %v429 = vsel %vm413, 1.0, 0.0
        %v430 = vld [vmem:[#allocation2] sm:$0xff]
        %v431 = vld [vmem:[#allocation2 + $0x8] sm:$0xff]
        %v432 = vld [vmem:[%s275] sm:$0xff]
        %v433 = vld [vmem:[%s275 + $0x8] sm:$0xff]
        %v434 = vld [vmem:[%s275 + $0x10] sm:$0xff]
        %v435 = vld [vmem:[%s275 + $0x18] sm:$0xff]
        %v436 = vld [vmem:[%s275 + $0x20] sm:$0xff]
        %v437 = vld [vmem:[%s275 + $0x28] sm:$0xff]
        %v438 = vld [vmem:[%s275 + $0x30] sm:$0xff]
        %v439 = vld [vmem:[%s275 + $0x38] sm:$0xff]
        %v440 = vld [vmem:[%s275 + $0x40] sm:$0xff]
        %v441 = vld [vmem:[%s275 + $0x48] sm:$0xff]
        %v442 = vld [vmem:[%s275 + $0x50] sm:$0xff]
        %v443 = vld [vmem:[%s275 + $0x58] sm:$0xff]
        %v444 = vld [vmem:[%s275 + $0x60] sm:$0xff]
        %v445 = vld [vmem:[%s275 + $0x68] sm:$0xff]
        %v446 = vld [vmem:[%s275 + $0x70] sm:$0xff]
        %v447 = vld [vmem:[%s275 + $0x78] sm:$0xff]
        %v448 = vld [vmem:[%s4] sm:$0xff]
        %v449 = vld [vmem:[%s4 + $0x8] sm:$0xff]
        %v450 = vld [vmem:[%s4 + $0x10] sm:$0xff]
        %v451 = vld [vmem:[%s4 + $0x18] sm:$0xff]
        %v452 = vld [vmem:[%s4 + $0x20] sm:$0xff]
        %v453 = vld [vmem:[%s4 + $0x28] sm:$0xff]
        %v454 = vld [vmem:[%s4 + $0x30] sm:$0xff]
        %v455 = vld [vmem:[%s4 + $0x38] sm:$0xff]
        %v456 = vld [vmem:[%s4 + $0x40] sm:$0xff]
        %v457 = vld [vmem:[%s4 + $0x48] sm:$0xff]
        %vm458 = vcmask 654336
        %v460 = vsel %vm458, %v432, 0
        %v463 = vsel %vm458, %v433, 0
        %v466 = vsel %vm458, %v434, 0
        %v469 = vsel %vm458, %v435, 0
        %v472 = vsel %vm458, %v436, 0
        %v475 = vsel %vm458, %v437, 0
        %v478 = vsel %vm458, %v438, 0
        %v481 = vsel %vm458, %v439, 0
        %v484 = vsel %vm458, %v440, 0
        %v487 = vsel %vm458, %v441, 0
        %v490 = vsel %vm458, %v442, 0
        %v493 = vsel %vm458, %v443, 0
        %v496 = vsel %vm458, %v444, 0
        %v499 = vsel %vm458, %v445, 0
        %v502 = vsel %vm458, %v446, 0
        %v505 = vsel %vm458, %v447, 0
        %507 = vmatprep.subr.mxu0 0.0
        %508 = vmatpush1.msra.mxu0 0.0
        %509 = vmatprep.subr.mxu0 0.0
        %510 = vmatpush1.msra.mxu0 0.0
        %511 = vmatprep.subr.mxu0 0.0
        %512 = vmatpush1.msra.mxu0 0.0
        %513 = vmatprep.subr.mxu0 0.0
        %514 = vmatpush1.msra.mxu0 0.0
        %515 = vmatprep.subr.mxu0 0.0
        %516 = vmatpush1.msra.mxu0 0.0
        %517 = vmatprep.subr.mxu0 0.0
        %518 = vmatpush1.msra.mxu0 0.0
        %519 = vmatprep.subr.mxu0 0.0
        %520 = vmatpush1.msra.mxu0 %v457
        %521 = vmatprep.subr.mxu0 0.0
        %522 = vmatpush1.msra.mxu0 %v456
        %523 = vmatprep.subr.mxu0 0.0
        %524 = vmatpush1.msra.mxu0 %v455
        %525 = vmatprep.subr.mxu0 0.0
        %526 = vmatpush1.msra.mxu0 %v454
        %527 = vmatprep.subr.mxu0 0.0
        %528 = vmatpush1.msra.mxu0 %v453
        %529 = vmatprep.subr.mxu0 0.0
        %530 = vmatpush1.msra.mxu0 %v452
        %531 = vmatprep.subr.mxu0 0.0
        %532 = vmatpush1.msra.mxu0 %v451
        %533 = vmatprep.subr.mxu0 0.0
        %534 = vmatpush1.msra.mxu0 %v450
        %535 = vmatprep.subr.mxu0 0.0
        %536 = vmatpush1.msra.mxu0 %v449
        %537 = vmatprep.subr.mxu0 0.0
        %538 = vmatpush1.msra.mxu0 %v448
        %539 = vmatprep.subr.mxu0 0.0
        %540 = vmatpush2.msra.mxu0 0.0
        %541 = vmatprep.subr.mxu0 0.0
        %542 = vmatpush2.msra.mxu0 0.0
        %543 = vmatprep.subr.mxu0 0.0
        %544 = vmatpush2.msra.mxu0 0.0
        %545 = vmatprep.subr.mxu0 0.0
        %546 = vmatpush2.msra.mxu0 0.0
        %547 = vmatprep.subr.mxu0 0.0
        %548 = vmatpush2.msra.mxu0 0.0
        %549 = vmatprep.subr.mxu0 0.0
        %550 = vmatpush2.msra.mxu0 0.0
        %551 = vmatprep.subr.mxu0 0.0
        %552 = vmatpush2.msra.mxu0 0.0
        %553 = vmatprep.subr.mxu0 0.0
        %554 = vmatpush2.msra.mxu0 0.0
        %555 = vmatprep.subr.mxu0 0.0
        %556 = vmatpush2.msra.mxu0 0.0
        %557 = vmatprep.subr.mxu0 0.0
        %558 = vmatpush2.msra.mxu0 0.0
        %559 = vmatprep.subr.mxu0 0.0
        %560 = vmatpush2.msra.mxu0 0.0
        %561 = vmatprep.subr.mxu0 0.0
        %562 = vmatpush2.msra.mxu0 0.0
        %563 = vmatprep.subr.mxu0 0.0
        %564 = vmatpush2.msra.mxu0 0.0
        %565 = vmatprep.subr.mxu0 0.0
        %566 = vmatpush2.msra.mxu0 0.0
        %567 = vmatprep.subr.mxu0 0.0
        %568 = vmatpush2.msra.mxu0 0.0
        %569 = vmatprep.subr.mxu0 0.0
        %570 = vmatpush2.msra.mxu0 0.0
        %571 = vmatprep.mubr.f32.mxu0 0.0
        %572 = vmatmul.mubr.f32.gmra.mxu0 %v460
        %v573 = vpop.f32.mrf.mxu0
        %v574 = vadd.f32 0.0, %v573
        %v575 = vpop.f32.mrf.mxu0
        %576 = vmatprep.mubr.f32.mxu0 0.0
        %577 = vmatmul.mubr.f32.gmra.mxu0 %v463
        %v578 = vpop.f32.mrf.mxu0
        %v579 = vadd.f32 0.0, %v578
        %v580 = vpop.f32.mrf.mxu0
        %581 = vmatprep.mubr.f32.mxu0 0.0
        %582 = vmatmul.mubr.f32.gmra.mxu0 %v466
        %v583 = vpop.f32.mrf.mxu0
        %v584 = vadd.f32 0.0, %v583
        %v585 = vpop.f32.mrf.mxu0
        %586 = vmatprep.mubr.f32.mxu0 0.0
        %587 = vmatmul.mubr.f32.gmra.mxu0 %v469
        %v588 = vpop.f32.mrf.mxu0
        %v589 = vadd.f32 0.0, %v588
        %v590 = vpop.f32.mrf.mxu0
        %591 = vmatprep.mubr.f32.mxu0 0.0
        %592 = vmatmul.mubr.f32.gmra.mxu0 %v472
        %v593 = vpop.f32.mrf.mxu0
        %v594 = vadd.f32 0.0, %v593
        %v595 = vpop.f32.mrf.mxu0
        %596 = vmatprep.mubr.f32.mxu0 0.0
        %597 = vmatmul.mubr.f32.gmra.mxu0 %v475
        %v598 = vpop.f32.mrf.mxu0
        %v599 = vadd.f32 0.0, %v598
        %v600 = vpop.f32.mrf.mxu0
        %601 = vmatprep.mubr.f32.mxu0 0.0
        %602 = vmatmul.mubr.f32.gmra.mxu0 %v478
        %v603 = vpop.f32.mrf.mxu0
        %v604 = vadd.f32 0.0, %v603
        %v605 = vpop.f32.mrf.mxu0
        %606 = vmatprep.mubr.f32.mxu0 0.0
        %607 = vmatmul.mubr.f32.gmra.mxu0 %v481
        %v608 = vpop.f32.mrf.mxu0
        %v609 = vadd.f32 0.0, %v608
        %v610 = vpop.f32.mrf.mxu0
        %611 = vmatprep.mubr.f32.mxu0 0.0
        %612 = vmatmul.mubr.f32.gmra.mxu0 %v484
        %v613 = vpop.f32.mrf.mxu0
        %v614 = vadd.f32 0.0, %v613
        %v615 = vpop.f32.mrf.mxu0
        %616 = vmatprep.mubr.f32.mxu0 0.0
        %617 = vmatmul.mubr.f32.gmra.mxu0 %v487
        %v618 = vpop.f32.mrf.mxu0
        %v619 = vadd.f32 0.0, %v618
        %v620 = vpop.f32.mrf.mxu0
        %621 = vmatprep.mubr.f32.mxu0 0.0
        %622 = vmatmul.mubr.f32.gmra.mxu0 %v490
        %v623 = vpop.f32.mrf.mxu0
        %v624 = vadd.f32 0.0, %v623
        %v625 = vpop.f32.mrf.mxu0
        %626 = vmatprep.mubr.f32.mxu0 0.0
        %627 = vmatmul.mubr.f32.gmra.mxu0 %v493
        %v628 = vpop.f32.mrf.mxu0
        %v629 = vadd.f32 0.0, %v628
        %v630 = vpop.f32.mrf.mxu0
        %631 = vmatprep.mubr.f32.mxu0 0.0
        %632 = vmatmul.mubr.f32.gmra.mxu0 %v496
        %v633 = vpop.f32.mrf.mxu0
        %v634 = vadd.f32 0.0, %v633
        %v635 = vpop.f32.mrf.mxu0
        %636 = vmatprep.mubr.f32.mxu0 0.0
        %637 = vmatmul.mubr.f32.gmra.mxu0 %v499
        %v638 = vpop.f32.mrf.mxu0
        %v639 = vadd.f32 0.0, %v638
        %v640 = vpop.f32.mrf.mxu0
        %641 = vmatprep.mubr.f32.mxu0 0.0
        %642 = vmatmul.mubr.f32.gmra.mxu0 %v502
        %v643 = vpop.f32.mrf.mxu0
        %v644 = vadd.f32 0.0, %v643
        %v645 = vpop.f32.mrf.mxu0
        %646 = vmatprep.mubr.f32.mxu0 0.0
        %647 = vmatmul.mubr.f32.gmra.mxu0 %v505
        %v648 = vpop.f32.mrf.mxu0
        %v649 = vadd.f32 0.0, %v648
        %v650 = vpop.f32.mrf.mxu0
        %651 = vdwg.mxu0
        %vm652 = vcmask 130048
        %v654 = vsel %vm652, %v414, 0
        %v657 = vsel %vm652, %v415, 0
        %v660 = vsel %vm652, %v416, 0
        %v663 = vsel %vm652, %v417, 0
        %v666 = vsel %vm652, %v418, 0
        %v669 = vsel %vm652, %v419, 0
        %v672 = vsel %vm652, %v420, 0
        %v675 = vsel %vm652, %v421, 0
        %v678 = vsel %vm652, %v422, 0
        %v681 = vsel %vm652, %v423, 0
        %v684 = vsel %vm652, %v424, 0
        %v687 = vsel %vm652, %v425, 0
        %v690 = vsel %vm652, %v426, 0
        %v693 = vsel %vm652, %v427, 0
        %v696 = vsel %vm652, %v428, 0
        %v699 = vsel %vm652, %v429, 0
        %701 = vmatprep.subr.mxu0 0.0
        %702 = vmatpush1.msra.mxu0 0.0
        %703 = vmatprep.subr.mxu0 0.0
        %704 = vmatpush1.msra.mxu0 0.0
        %705 = vmatprep.subr.mxu0 0.0
        %706 = vmatpush1.msra.mxu0 0.0
        %707 = vmatprep.subr.mxu0 0.0
        %708 = vmatpush1.msra.mxu0 0.0
        %709 = vmatprep.subr.mxu0 0.0
        %710 = vmatpush1.msra.mxu0 0.0
        %711 = vmatprep.subr.mxu0 0.0
        %712 = vmatpush1.msra.mxu0 0.0
        %713 = vmatprep.subr.mxu0 0.0
        %714 = vmatpush1.msra.mxu0 0.0
        %715 = vmatprep.subr.mxu0 0.0
        %716 = vmatpush1.msra.mxu0 0.0
        %717 = vmatprep.subr.mxu0 0.0
        %718 = vmatpush1.msra.mxu0 0.0
        %719 = vmatprep.subr.mxu0 0.0
        %720 = vmatpush1.msra.mxu0 0.0
        %721 = vmatprep.subr.mxu0 0.0
        %722 = vmatpush1.msra.mxu0 0.0
        %723 = vmatprep.subr.mxu0 0.0
        %724 = vmatpush1.msra.mxu0 0.0
        %725 = vmatprep.subr.mxu0 0.0
        %726 = vmatpush1.msra.mxu0 0.0
        %727 = vmatprep.subr.mxu0 0.0
        %728 = vmatpush1.msra.mxu0 0.0
        %729 = vmatprep.subr.mxu0 0.0
        %730 = vmatpush1.msra.mxu0 %v431
        %731 = vmatprep.subr.mxu0 0.0
        %732 = vmatpush1.msra.mxu0 %v430
        %733 = vmatprep.subr.mxu0 0.0
        %734 = vmatpush2.msra.mxu0 0.0
        %735 = vmatprep.subr.mxu0 0.0
        %736 = vmatpush2.msra.mxu0 0.0
        %737 = vmatprep.subr.mxu0 0.0
        %738 = vmatpush2.msra.mxu0 0.0
        %739 = vmatprep.subr.mxu0 0.0
        %740 = vmatpush2.msra.mxu0 0.0
        %741 = vmatprep.subr.mxu0 0.0
        %742 = vmatpush2.msra.mxu0 0.0
        %743 = vmatprep.subr.mxu0 0.0
        %744 = vmatpush2.msra.mxu0 0.0
        %745 = vmatprep.subr.mxu0 0.0
        %746 = vmatpush2.msra.mxu0 0.0
        %747 = vmatprep.subr.mxu0 0.0
        %748 = vmatpush2.msra.mxu0 0.0
        %749 = vmatprep.subr.mxu0 0.0
        %750 = vmatpush2.msra.mxu0 0.0
        %751 = vmatprep.subr.mxu0 0.0
        %752 = vmatpush2.msra.mxu0 0.0
        %753 = vmatprep.subr.mxu0 0.0
        %754 = vmatpush2.msra.mxu0 0.0
        %755 = vmatprep.subr.mxu0 0.0
        %756 = vmatpush2.msra.mxu0 0.0
        %757 = vmatprep.subr.mxu0 0.0
        %758 = vmatpush2.msra.mxu0 0.0
        %759 = vmatprep.subr.mxu0 0.0
        %760 = vmatpush2.msra.mxu0 0.0
        %761 = vmatprep.subr.mxu0 0.0
        %762 = vmatpush2.msra.mxu0 0.0
        %763 = vmatprep.subr.mxu0 0.0
        %764 = vmatpush2.msra.mxu0 0.0
        %765 = vmatprep.mubr.f32.mxu0 0.0
        %766 = vmatmul.mubr.f32.gmra.mxu0 %v654
        %v767 = vpop.f32.mrf.mxu0
        %v768 = vadd.f32 %v574, %v767
        %v769 = vpop.f32.mrf.mxu0
        %770 = vmatprep.mubr.f32.mxu0 0.0
        %771 = vmatmul.mubr.f32.gmra.mxu0 %v657
        %v772 = vpop.f32.mrf.mxu0
        %v773 = vadd.f32 %v579, %v772
        %v774 = vpop.f32.mrf.mxu0
        %775 = vmatprep.mubr.f32.mxu0 0.0
        %776 = vmatmul.mubr.f32.gmra.mxu0 %v660
        %v777 = vpop.f32.mrf.mxu0
        %v778 = vadd.f32 %v584, %v777
        %v779 = vpop.f32.mrf.mxu0
        %780 = vmatprep.mubr.f32.mxu0 0.0
        %781 = vmatmul.mubr.f32.gmra.mxu0 %v663
        %v782 = vpop.f32.mrf.mxu0
        %v783 = vadd.f32 %v589, %v782
        %v784 = vpop.f32.mrf.mxu0
        %785 = vmatprep.mubr.f32.mxu0 0.0
        %786 = vmatmul.mubr.f32.gmra.mxu0 %v666
        %v787 = vpop.f32.mrf.mxu0
        %v788 = vadd.f32 %v594, %v787
        %v789 = vpop.f32.mrf.mxu0
        %790 = vmatprep.mubr.f32.mxu0 0.0
        %791 = vmatmul.mubr.f32.gmra.mxu0 %v669
        %v792 = vpop.f32.mrf.mxu0
        %v793 = vadd.f32 %v599, %v792
        %v794 = vpop.f32.mrf.mxu0
        %795 = vmatprep.mubr.f32.mxu0 0.0
        %796 = vmatmul.mubr.f32.gmra.mxu0 %v672
        %v797 = vpop.f32.mrf.mxu0
        %v798 = vadd.f32 %v604, %v797
        %v799 = vpop.f32.mrf.mxu0
        %800 = vmatprep.mubr.f32.mxu0 0.0
        %801 = vmatmul.mubr.f32.gmra.mxu0 %v675
        %v802 = vpop.f32.mrf.mxu0
        %v803 = vadd.f32 %v609, %v802
        %v804 = vpop.f32.mrf.mxu0
        %805 = vmatprep.mubr.f32.mxu0 0.0
        %806 = vmatmul.mubr.f32.gmra.mxu0 %v678
        %v807 = vpop.f32.mrf.mxu0
        %v808 = vadd.f32 %v614, %v807
        %v809 = vpop.f32.mrf.mxu0
        %810 = vmatprep.mubr.f32.mxu0 0.0
        %811 = vmatmul.mubr.f32.gmra.mxu0 %v681
        %v812 = vpop.f32.mrf.mxu0
        %v813 = vadd.f32 %v619, %v812
        %v814 = vpop.f32.mrf.mxu0
        %815 = vmatprep.mubr.f32.mxu0 0.0
        %816 = vmatmul.mubr.f32.gmra.mxu0 %v684
        %v817 = vpop.f32.mrf.mxu0
        %v818 = vadd.f32 %v624, %v817
        %v819 = vpop.f32.mrf.mxu0
        %820 = vmatprep.mubr.f32.mxu0 0.0
        %821 = vmatmul.mubr.f32.gmra.mxu0 %v687
        %v822 = vpop.f32.mrf.mxu0
        %v823 = vadd.f32 %v629, %v822
        %v824 = vpop.f32.mrf.mxu0
        %825 = vmatprep.mubr.f32.mxu0 0.0
        %826 = vmatmul.mubr.f32.gmra.mxu0 %v690
        %v827 = vpop.f32.mrf.mxu0
        %v828 = vadd.f32 %v634, %v827
        %v829 = vpop.f32.mrf.mxu0
        %830 = vmatprep.mubr.f32.mxu0 0.0
        %831 = vmatmul.mubr.f32.gmra.mxu0 %v693
        %v832 = vpop.f32.mrf.mxu0
        %v833 = vadd.f32 %v639, %v832
        %v834 = vpop.f32.mrf.mxu0
        %835 = vmatprep.mubr.f32.mxu0 0.0
        %836 = vmatmul.mubr.f32.gmra.mxu0 %v696
        %v837 = vpop.f32.mrf.mxu0
        %v838 = vadd.f32 %v644, %v837
        %v839 = vpop.f32.mrf.mxu0
        %840 = vmatprep.mubr.f32.mxu0 0.0
        %841 = vmatmul.mubr.f32.gmra.mxu0 %v699
        %v842 = vpop.f32.mrf.mxu0
        %v843 = vadd.f32 %v649, %v842
        %v844 = vpop.f32.mrf.mxu0
        %845 = vdwg.mxu0
        %862 = vrot.lane.b32.xlu0 %v574, 96
        %v863 = vpop.permute.xlu0 %862
        %864 = vrot.lane.b32.xlu0 %v579, 96
        %v865 = vpop.permute.xlu0 %864
        %866 = vrot.lane.b32.xlu0 %v584, 96
        %v867 = vpop.permute.xlu0 %866
        %868 = vrot.lane.b32.xlu0 %v589, 96
        %v869 = vpop.permute.xlu0 %868
        %870 = vrot.lane.b32.xlu0 %v594, 96
        %v871 = vpop.permute.xlu0 %870
        %872 = vrot.lane.b32.xlu0 %v599, 96
        %v873 = vpop.permute.xlu0 %872
        %874 = vrot.lane.b32.xlu0 %v604, 96
        %v875 = vpop.permute.xlu0 %874
        %876 = vrot.lane.b32.xlu0 %v609, 96
        %v877 = vpop.permute.xlu0 %876
        %878 = vrot.lane.b32.xlu0 %v614, 96
        %v879 = vpop.permute.xlu0 %878
        %880 = vrot.lane.b32.xlu0 %v619, 96
        %v881 = vpop.permute.xlu0 %880
        %882 = vrot.lane.b32.xlu0 %v624, 96
        %v883 = vpop.permute.xlu0 %882
        %884 = vrot.lane.b32.xlu0 %v629, 96
        %v885 = vpop.permute.xlu0 %884
        %886 = vrot.lane.b32.xlu0 %v634, 96
        %v887 = vpop.permute.xlu0 %886
        %888 = vrot.lane.b32.xlu0 %v639, 96
        %v889 = vpop.permute.xlu0 %888
        %890 = vrot.lane.b32.xlu0 %v644, 96
        %v891 = vpop.permute.xlu0 %890
        %892 = vrot.lane.b32.xlu0 %v649, 96
        %v893 = vpop.permute.xlu0 %892
        %v910 = vmul.f32 %v768, %v863
        %v911 = vmul.f32 %v773, %v865
        %v912 = vmul.f32 %v778, %v867
        %v913 = vmul.f32 %v783, %v869
        %v914 = vmul.f32 %v788, %v871
        %v915 = vmul.f32 %v793, %v873
        %v916 = vmul.f32 %v798, %v875
        %v917 = vmul.f32 %v803, %v877
        %v918 = vmul.f32 %v808, %v879
        %v919 = vmul.f32 %v813, %v881
        %v920 = vmul.f32 %v818, %v883
        %v921 = vmul.f32 %v823, %v885
        %v922 = vmul.f32 %v828, %v887
        %v923 = vmul.f32 %v833, %v889
        %v924 = vmul.f32 %v838, %v891
        %v925 = vmul.f32 %v843, %v893
        %v926 = vlaneseq
        %v927 = vshrl.u32 %v926, 7
        %v928 = vadd.s32 %v927, 8
        %v929 = vld [vmem:[%s270] sm:$0x1]
        %v930 = vlaneseq
        %v931 = vshrl.u32 %v930, 7
        %v932 = vsub.s32 0, %v931
        %v933 = vrot.slane %v929, %v932
        %vm934 = vcmp.eq.s32.totalorder %v933, %v927
        %vm935 = vcmp.eq.s32.totalorder %v933, %v928
        %v936 = vsel %vm934, 1.0, 0.0
        %v937 = vsel %vm935, 1.0, 0.0
        %v938 = vld [vmem:[#allocation3] sm:$0xff]
        %v939 = vld [vmem:[#allocation3 + $0x8] sm:$0xff]
        %940 = vmatprep.subr.mxu0 0.0
        %941 = vmatpush1.msra.mxu0 %v925
        %942 = vmatprep.subr.mxu0 0.0
        %943 = vmatpush1.msra.mxu0 %v924
        %944 = vmatprep.subr.mxu0 0.0
        %945 = vmatpush1.msra.mxu0 %v923
        %946 = vmatprep.subr.mxu0 0.0
        %947 = vmatpush1.msra.mxu0 %v922
        %948 = vmatprep.subr.mxu0 0.0
        %949 = vmatpush1.msra.mxu0 %v921
        %950 = vmatprep.subr.mxu0 0.0
        %951 = vmatpush1.msra.mxu0 %v920
        %952 = vmatprep.subr.mxu0 0.0
        %953 = vmatpush1.msra.mxu0 %v919
        %954 = vmatprep.subr.mxu0 0.0
        %955 = vmatpush1.msra.mxu0 %v918
        %956 = vmatprep.subr.mxu0 0.0
        %957 = vmatpush1.msra.mxu0 %v917
        %958 = vmatprep.subr.mxu0 0.0
        %959 = vmatpush1.msra.mxu0 %v916
        %960 = vmatprep.subr.mxu0 0.0
        %961 = vmatpush1.msra.mxu0 %v915
        %962 = vmatprep.subr.mxu0 0.0
        %963 = vmatpush1.msra.mxu0 %v914
        %964 = vmatprep.subr.mxu0 0.0
        %965 = vmatpush1.msra.mxu0 %v913
        %966 = vmatprep.subr.mxu0 0.0
        %967 = vmatpush1.msra.mxu0 %v912
        %968 = vmatprep.subr.mxu0 0.0
        %969 = vmatpush1.msra.mxu0 %v911
        %970 = vmatprep.subr.mxu0 0.0
        %971 = vmatpush1.msra.mxu0 %v910
        %972 = vmatprep.subr.mxu0 0.0
        %973 = vmatpush2.msra.mxu0 0.0
        %974 = vmatprep.subr.mxu0 0.0
        %975 = vmatpush2.msra.mxu0 0.0
        %976 = vmatprep.subr.mxu0 0.0
        %977 = vmatpush2.msra.mxu0 0.0
        %978 = vmatprep.subr.mxu0 0.0
        %979 = vmatpush2.msra.mxu0 0.0
        %980 = vmatprep.subr.mxu0 0.0
        %981 = vmatpush2.msra.mxu0 0.0
        %982 = vmatprep.subr.mxu0 0.0
        %983 = vmatpush2.msra.mxu0 0.0
        %984 = vmatprep.subr.mxu0 0.0
        %985 = vmatpush2.msra.mxu0 0.0
        %986 = vmatprep.subr.mxu0 0.0
        %987 = vmatpush2.msra.mxu0 0.0
        %988 = vmatprep.subr.mxu0 0.0
        %989 = vmatpush2.msra.mxu0 0.0
        %990 = vmatprep.subr.mxu0 0.0
        %991 = vmatpush2.msra.mxu0 0.0
        %992 = vmatprep.subr.mxu0 0.0
        %993 = vmatpush2.msra.mxu0 0.0
        %994 = vmatprep.subr.mxu0 0.0
        %995 = vmatpush2.msra.mxu0 0.0
        %996 = vmatprep.subr.mxu0 0.0
        %997 = vmatpush2.msra.mxu0 0.0
        %998 = vmatprep.subr.mxu0 0.0
        %999 = vmatpush2.msra.mxu0 0.0
        %1000 = vmatprep.subr.mxu0 0.0
        %1001 = vmatpush2.msra.mxu0 0.0
        %1002 = vmatprep.subr.mxu0 0.0
        %1003 = vmatpush2.msra.mxu0 0.0
        %1004 = vmatprep.mubr.f32.mxu0 0.0
        %1005 = vmatmul.mubr.f32.gmra.mxu0 %v936
        %v1006 = vpop.f32.mrf.mxu0
        %v1007 = vadd.f32 0.0, %v1006
        %v1008 = vpop.f32.mrf.mxu0
        %1009 = vmatprep.mubr.f32.mxu0 0.0
        %1010 = vmatmul.mubr.f32.gmra.mxu0 %v937
        %v1011 = vpop.f32.mrf.mxu0
        %v1012 = vadd.f32 0.0, %v1011
        %v1013 = vpop.f32.mrf.mxu0
        %1014 = vdwg.mxu0
        %v1015 = vadd.f32 %v938, %v1007
        %v1016 = vadd.f32 %v939, %v1012
        %vm1017 = vcmask 261120
        %1018 = vst.msk [vmem:[#allocation3] sm:$0xff] %vm1017, %v1015
        %1019 = vst.msk [vmem:[#allocation3 + $0x8] sm:$0xff] %vm1017, %v1016
        %p1020 = scmp.eq.s32.totalorder %s19, 2
        // Predicated region
        $region84: #{tpu_custom_call.1} parent=43 // pred_check
          %p1021 = pneg %p1020
        $region85: #{tpu_custom_call.1} parent=43 // pred_check_branch
          %1023 = sbr.rel (%p1021) target = $region87
        $region86: #{tpu_custom_call.1} parent=43 // pred_region
          %v1024 = vld [vmem:[#allocation3] sm:$0xff]
          %v1025 = vld [vmem:[#allocation3 + $0x8] sm:$0xff]
          %v1026 = vld [vmem:[%s5] sm:$0xff]
          %v1027 = vld [vmem:[%s5 + $0x8] sm:$0xff]
          %v1028 = vld [vmem:[%s5 + $0x10] sm:$0xff]
          %v1029 = vld [vmem:[%s5 + $0x18] sm:$0xff]
          %v1030 = vld [vmem:[%s6] sm:$0x1]
          %v1032 = vlaneseq
          %v1033 = vshrl.u32 %v1032, 7
          %v1034 = vsub.s32 0, %v1033
          %v1035 = vrot.slane %v1030, %v1034
          %v1038 = vsel %vm1017, %v1024, 0
          %v1041 = vsel %vm1017, %v1025, 0
          %1043 = vmatprep.subr.mxu0 0.0
          %1044 = vmatpush1.msra.mxu0 0.0
          %1045 = vmatprep.subr.mxu0 0.0
          %1046 = vmatpush1.msra.mxu0 0.0
          %1047 = vmatprep.subr.mxu0 0.0
          %1048 = vmatpush1.msra.mxu0 0.0
          %1049 = vmatprep.subr.mxu0 0.0
          %1050 = vmatpush1.msra.mxu0 0.0
          %1051 = vmatprep.subr.mxu0 0.0
          %1052 = vmatpush1.msra.mxu0 0.0
          %1053 = vmatprep.subr.mxu0 0.0
          %1054 = vmatpush1.msra.mxu0 0.0
          %1055 = vmatprep.subr.mxu0 0.0
          %1056 = vmatpush1.msra.mxu0 0.0
          %1057 = vmatprep.subr.mxu0 0.0
          %1058 = vmatpush1.msra.mxu0 0.0
          %1059 = vmatprep.subr.mxu0 0.0
          %1060 = vmatpush1.msra.mxu0 0.0
          %1061 = vmatprep.subr.mxu0 0.0
          %1062 = vmatpush1.msra.mxu0 0.0
          %1063 = vmatprep.subr.mxu0 0.0
          %1064 = vmatpush1.msra.mxu0 0.0
          %1065 = vmatprep.subr.mxu0 0.0
          %1066 = vmatpush1.msra.mxu0 0.0
          %1067 = vmatprep.subr.mxu0 0.0
          %1068 = vmatpush1.msra.mxu0 %v1029
          %1069 = vmatprep.subr.mxu0 0.0
          %1070 = vmatpush1.msra.mxu0 %v1028
          %1071 = vmatprep.subr.mxu0 0.0
          %1072 = vmatpush1.msra.mxu0 %v1027
          %1073 = vmatprep.subr.mxu0 0.0
          %1074 = vmatpush1.msra.mxu0 %v1026
          %1075 = vmatprep.subr.mxu0 0.0
          %1076 = vmatpush2.msra.mxu0 0.0
          %1077 = vmatprep.subr.mxu0 0.0
          %1078 = vmatpush2.msra.mxu0 0.0
          %1079 = vmatprep.subr.mxu0 0.0
          %1080 = vmatpush2.msra.mxu0 0.0
          %1081 = vmatprep.subr.mxu0 0.0
          %1082 = vmatpush2.msra.mxu0 0.0
          %1083 = vmatprep.subr.mxu0 0.0
          %1084 = vmatpush2.msra.mxu0 0.0
          %1085 = vmatprep.subr.mxu0 0.0
          %1086 = vmatpush2.msra.mxu0 0.0
          %1087 = vmatprep.subr.mxu0 0.0
          %1088 = vmatpush2.msra.mxu0 0.0
          %1089 = vmatprep.subr.mxu0 0.0
          %1090 = vmatpush2.msra.mxu0 0.0
          %1091 = vmatprep.subr.mxu0 0.0
          %1092 = vmatpush2.msra.mxu0 0.0
          %1093 = vmatprep.subr.mxu0 0.0
          %1094 = vmatpush2.msra.mxu0 0.0
          %1095 = vmatprep.subr.mxu0 0.0
          %1096 = vmatpush2.msra.mxu0 0.0
          %1097 = vmatprep.subr.mxu0 0.0
          %1098 = vmatpush2.msra.mxu0 0.0
          %1099 = vmatprep.subr.mxu0 0.0
          %1100 = vmatpush2.msra.mxu0 0.0
          %1101 = vmatprep.subr.mxu0 0.0
          %1102 = vmatpush2.msra.mxu0 0.0
          %1103 = vmatprep.subr.mxu0 0.0
          %1104 = vmatpush2.msra.mxu0 0.0
          %1105 = vmatprep.subr.mxu0 0.0
          %1106 = vmatpush2.msra.mxu0 0.0
          %1107 = vmatprep.mubr.f32.mxu0 0.0
          %1108 = vmatmul.mubr.f32.gmra.mxu0 %v1038
          %v1109 = vpop.f32.mrf.mxu0
          %v1110 = vadd.f32 %v1035, %v1109
          %v1111 = vpop.f32.mrf.mxu0
          %1112 = vmatprep.mubr.f32.mxu0 0.0
          %1113 = vmatmul.mubr.f32.gmra.mxu0 %v1041
          %v1114 = vpop.f32.mrf.mxu0
          %v1115 = vadd.f32 %v1035, %v1114
          %v1116 = vpop.f32.mrf.mxu0
          %1117 = vdwg.mxu0
          %1118 = vst.msk [vmem:[#allocation4] sm:$0xff] %vm1017, %v1110
          %1119 = vst.msk [vmem:[#allocation4 + $0x8] sm:$0xff] %vm1017, %v1115
        $region87: #{tpu_custom_call.1} parent=43 // pred_fallthru
          _
        // Predicated region
        $region88: #{tpu_custom_call.1} parent=43 // pred_check
          %p1120 = pneg %p173
        $region89: #{tpu_custom_call.1} parent=43 // pred_check_branch
          %1122 = sbr.rel (%p1120) target = $region91
        $region90: #{tpu_custom_call.1} parent=43 // pred_region
          %s1124 = ssub.s32 256, 256
          %1125 = vsyncadd [#allocation5], %s1124
          %s1126 = sshll.u32 [#allocation4], 4
          %s1127 = int_to_ptr.vmem [resolvable:$true] %s1126
          %1132 = dma.vmem_to_hbm [thread:$0]  %s1127, 256, %s7, [#allocation5], 128, 128, 8
        $region91: #{tpu_custom_call.1} parent=43 // pred_fallthru
          _
        // Predicated region
        $region92: #{tpu_custom_call.1} parent=43 // pred_check
          %p1133 = pneg %p173
        $region93: #{tpu_custom_call.1} parent=43 // pred_check_branch
          %1135 = sbr.rel (%p1133) target = $region95
        $region94: #{tpu_custom_call.1} parent=43 // pred_region
          %1136 = dma.done [#allocation5], 256
        $region95: #{tpu_custom_call.1} parent=43 // pred_fallthru
          _
      $region44: #{tpu_custom_call.1} parent=5 // pred_fallthru
        _
      %p1137 = scmp.le.s32.totalorder 2, %s14
      // Predicated region
      $region96: #{tpu_custom_call.1} parent=5 // pred_check
        %p1138 = pneg %p1137
      $region97: #{tpu_custom_call.1} parent=5 // pred_check_branch
        %1140 = sbr.rel (%p1138) target = $region99
      $region98: #{tpu_custom_call.1} parent=5 // pred_region
        %s1141 = ssub.s32 %s14, 2
      $region99: #{tpu_custom_call.1} parent=5 // pred_fallthru
        _
    $region6: #{tpu_custom_call.1} parent=1 // loop_footer
      %s18 = sadd.s32 1, %s14
    $region7: #{tpu_custom_call.1} parent=1 // loop_footer_branch
      %13 = sbr.rel target = $region3
    $region8: #{tpu_custom_call.1} parent=1 // loop_exit
      _
    %1142 = vsyncpa [#allocation5], 1
    %s1143 = scalar_lea.sflag [#allocation5], 1
    %1144 = vsyncpa %s1143, 1

</llo_original>
